<compile_context>
chip_gen: v7x
topology: tpu7x:2x2x1
jax: 0.10.0
libtpu: 0.0.40
codegen_flags: <defaults>
</compile_context>

<pallas_src>
import functools
import math

import jax
import jax.numpy as jnp
from jax.experimental import pallas as pl
from jax.experimental.pallas import tpu as pltpu

LANE = 128
SUBLANE = 8
MAX_CHUNK_ROWS = 4096   # 4096 * 128 * 4 B = 2 MiB per input block; x2 inputs x2 bufs = 8 MiB VMEM


def _cdiv(a, b):
    return (a + b - 1) // b


# ---------------------------------------------------------------------------
# Pallas kernel: chunked per-time-step sum of
#   theta*|a - b| + (1 - theta)*(|a| + |b|)
# (identical to (|a-b| - |a| - |b|)*theta + |a| + |b|; mean applied in wrapper)
# ---------------------------------------------------------------------------
def _st_loss_kernel(d1_ref, d0_ref, o_ref, *, theta, rows_total, chunk_rows,
                    cps, num_chunks, ragged):
    s = pl.program_id(1)
    c = pl.program_id(2)

    @pl.when(c == 0)
    def _():
        o_ref[...] = jnp.zeros_like(o_ref)

    one_m_theta = 1.0 - theta

    def accumulate(mask_rows):
        # Upcast in-kernel (required on v5e which has no bf16 VPU; no-op for f32).
        a = d1_ref[...].astype(jnp.float32)          # (chunk_rows, 128)
        b = d0_ref[...].astype(jnp.float32)
        val = theta * jnp.abs(a - b) + one_m_theta * (jnp.abs(a) + jnp.abs(b))
        if mask_rows:
            # Only the last (ragged) logical chunk pays for the iota + select.
            g = s * cps + c
            row = jax.lax.broadcasted_iota(jnp.int32, val.shape, 0)
            val = jnp.where(row < rows_total - g * chunk_rows, val, 0.0)
        # Layout-preserving reshape; the axis-0 reduce is full-vreg VALU adds
        # (no per-chunk sublane/XLU reduce, and the (8,128) store is unmasked).
        val = val.reshape(chunk_rows // SUBLANE, SUBLANE, LANE)
        o_ref[...] += jnp.sum(val, axis=0)           # (8, 128)

    if not ragged:
        accumulate(False)
    else:
        last = num_chunks - 1
        g = s * cps + c

        @pl.when(g != last)
        def _():
            accumulate(False)

        @pl.when(g == last)
        def _():
            accumulate(True)


def _pallas_loss(d1, d0w, theta):
    """loss[t] = mean((|d1-d0w| - |d1| - |d0w|)*theta + |d1| + |d0w|) per time step."""
    assert d1.shape == d0w.shape
    tm1 = d1.shape[0]
    n = math.prod(d1.shape[1:])

    a = d1.reshape(tm1, n)
    b = d0w.reshape(tm1, n)

    # Pad to a multiple of 8*128 so the reshaped row count is sublane-aligned;
    # f(0, 0) == 0 so zero padding is exact.  The common case (B*C*H*W % 1024 == 0)
    # takes the copy-free path.
    # TODO(synk): for n % 1024 != 0 this materializes a padded copy (one extra HBM
    # pass over both tensors); keep B*C*H*W a multiple of 1024 upstream to avoid it.
    tile = LANE * SUBLANE
    n_pad = _cdiv(n, tile) * tile
    if n_pad != n:
        a = jnp.pad(a, ((0, 0), (0, n_pad - n)))
        b = jnp.pad(b, ((0, 0), (0, n_pad - n)))
    rows = n_pad // LANE
    a = a.reshape(tm1, rows, LANE)
    b = b.reshape(tm1, rows, LANE)

    # Chunk the reduction axis (rows is always a multiple of 8).
    chunk = min(rows, MAX_CHUNK_ROWS)
    num_chunks = _cdiv(rows, chunk)

    # 2-way "parallel" split of the reduction so both v7x TensorCores are busy even
    # when T-1 is tiny/odd.  Nudge chunk so the chunk count is even -> no dummy
    # blocks -> zero extra HBM traffic on single-TC chips (v5e/v6e).
    if num_chunks >= 2:
        nsplit = 2
        if num_chunks % 2:
            target = num_chunks + 1
            chunk = _cdiv(_cdiv(rows, target), SUBLANE) * SUBLANE
            num_chunks = _cdiv(rows, chunk)
        cps = num_chunks // 2
    else:
        nsplit = 1
        cps = num_chunks                      # == 1

    ragged = (rows % chunk) != 0

    # NOTE: theta is baked in as a static Python float (a traced theta would be
    # frozen at trace time).
    kernel = functools.partial(
        _st_loss_kernel,
        theta=float(theta),
        rows_total=rows,
        chunk_rows=chunk,
        cps=cps,
        num_chunks=num_chunks,
        ragged=ragged,
    )

    itemsize = a.dtype.itemsize
    cost = pl.CostEstimate(
        flops=8 * tm1 * n,
        transcendentals=0,
        bytes_accessed=2 * tm1 * rows * LANE * itemsize
        + tm1 * nsplit * SUBLANE * LANE * 4,
    )

    out = pl.pallas_call(
        kernel,
        out_shape=jax.ShapeDtypeStruct((tm1, nsplit, SUBLANE, LANE), jnp.float32),
        grid_spec=pltpu.PrefetchScalarGridSpec(
            num_scalar_prefetch=0,
            grid=(tm1, nsplit, cps),
            in_specs=[
                pl.BlockSpec((None, chunk, LANE),
                             lambda t, s, c: (t, s * cps + c, 0)),
                pl.BlockSpec((None, chunk, LANE),
                             lambda t, s, c: (t, s * cps + c, 0)),
            ],
            out_specs=pl.BlockSpec((None, None, SUBLANE, LANE),
                                   lambda t, s, c: (t, s, 0, 0)),
        ),
        compiler_params=pltpu.CompilerParams(
            dimension_semantics=("parallel", "parallel", "arbitrary"),
        ),
        cost_estimate=cost,
    )(a, b)

    # Final cross-split / cross-sublane / cross-lane reduce (tiny, once per step),
    # then the mean normalization by the true element count.
    return jnp.sum(out, axis=(1, 2, 3)) * (1.0 / float(n))     # (T-1,)


# ---------------------------------------------------------------------------
# JAX (XLA) helpers for the motion-vector warp.
# TODO(synk): grid_sample / bilinear interpolate are data-dependent gathers with no
# clean Pallas TPU equivalent; they remain plain-JAX wrapper ops.  Longer term the
# 4-tap gather could be fused into the kernel (manual DMA gather) so d0w never
# round-trips HBM.
# ---------------------------------------------------------------------------
def _identity_grid(batch, height, width, dtype):
    """Normalized grid G with grid_sample(x, G, align_corners=False) == x.
    (Stand-in for models.IdentityGrid; [..., 0] = x over width, [..., 1] = y over height.)"""
    xs = (2.0 * jnp.arange(width, dtype=jnp.float32) + 1.0) / width - 1.0
    ys = (2.0 * jnp.arange(height, dtype=jnp.float32) + 1.0) / height - 1.0
    gx = jnp.broadcast_to(xs[None, :], (height, width))
    gy = jnp.broadcast_to(ys[:, None], (height, width))
    g = jnp.stack([gx, gy], axis=-1)
    return jnp.broadcast_to(g[None], (batch, height, width, 2)).astype(dtype)


def _upsample_bilinear(x, factor):
    """F.interpolate(x, scale_factor=factor, mode='bilinear', align_corners=False)."""
    b, c, h, w = x.shape
    out_h, out_w = h * factor, w * factor

    def src(out_size, in_size):
        o = jnp.arange(out_size, dtype=jnp.float32)
        s = jnp.maximum((o + 0.5) * (in_size / out_size) - 0.5, 0.0)
        i0 = jnp.minimum(jnp.floor(s).astype(jnp.int32), in_size - 1)
        i1 = jnp.minimum(i0 + 1, in_size - 1)
        return i0, i1, (s - i0.astype(jnp.float32)).astype(x.dtype)

    y0, y1, fy = src(out_h, h)
    x0, x1, fx = src(out_w, w)
    rows = (x[:, :, y0, :] * (1.0 - fy)[None, None, :, None]
            + x[:, :, y1, :] * fy[None, None, :, None])
    return (rows[:, :, :, x0] * (1.0 - fx)[None, None, None, :]
            + rows[:, :, :, x1] * fx[None, None, None, :])


def _grid_sample_bilinear(x, grid):
    """F.grid_sample(x, grid, mode='bilinear', padding_mode='zeros', align_corners=False)."""
    b, c, h, w = x.shape
    ix = (grid[..., 0] + 1.0) * (w * 0.5) - 0.5
    iy = (grid[..., 1] + 1.0) * (h * 0.5) - 0.5
    x0 = jnp.floor(ix)
    y0 = jnp.floor(iy)
    wx1 = ix - x0
    wy1 = iy - y0

    b_idx = jnp.arange(b)[:, None, None, None]
    c_idx = jnp.arange(c)[None, :, None, None]

    def tap(yc, xc, wgt):
        valid = (xc >= 0) & (xc <= w - 1) & (yc >= 0) & (yc <= h - 1)
        xi = jnp.clip(xc, 0, w - 1).astype(jnp.int32)
        yi = jnp.clip(yc, 0, h - 1).astype(jnp.int32)
        v = x[b_idx, c_idx, yi[:, None, :, :], xi[:, None, :, :]]
        wgt = jnp.where(valid, wgt, 0.0)
        return v * wgt[:, None, :, :].astype(x.dtype)

    return (tap(y0, x0, (1.0 - wy1) * (1.0 - wx1))
            + tap(y0, x0 + 1.0, (1.0 - wy1) * wx1)
            + tap(y0 + 1.0, x0, wy1 * (1.0 - wx1))
            + tap(y0 + 1.0, x0 + 1.0, wy1 * wx1))


def _warp_and_diff(img1, img2, mvs, factor):
    """Returns (d1, d0_warped), each (T-1, B, C, H, W)."""
    d = img1 - img2
    d1, d0 = d[1:], d[:-1]
    mv = mvs[1:]                                    # (T-1, B, h, w, 2)

    def prep(mv_t):
        bsz, h, w, _ = mv_t.shape
        disp = mv_t - _identity_grid(bsz, h, w, mv_t.dtype)
        disp = jnp.moveaxis(disp, 3, 1)             # (B, 2, h, w)
        disp = _upsample_bilinear(disp, factor)     # (B, 2, H, W)
        disp = jnp.moveaxis(disp, 1, 3)             # (B, H, W, 2)
        return disp + _identity_grid(bsz, h * factor, w * factor, mv_t.dtype)

    grids = jax.vmap(prep)(mv)                      # (T-1, B, H, W, 2)
    d0w = jax.vmap(_grid_sample_bilinear)(d0, grids)
    # NOTE: the PyTorch reference also computes p0v = grid_sample(img1[i-1], grid)
    # but never uses it in the loss; it is skipped here (dead code).
    return d1, d0w


def spatio_temporal_loss2(img1, img2, mvs, factor, theta):
    """img1, img2: (T, B, C, H, W); mvs: (T, B, H/factor, W/factor, 2) -> loss (T-1,)."""
    d1, d0w = _warp_and_diff(img1, img2, mvs, factor)
    return _pallas_loss(d1, d0w, theta)


if __name__ == "__main__":
    key = jax.random.PRNGKey(0)
    k1, k2, k3 = jax.random.split(key, 3)

    T, B, C, H, W = 3, 2, 4, 16, 16
    factor = 2
    theta = 0.5
    h, w = H // factor, W // factor

    img1 = jax.random.normal(k1, (T, B, C, H, W), dtype=jnp.float32)
    img2 = jax.random.normal(k2, (T, B, C, H, W), dtype=jnp.float32)
    # Motion-vector sampling grids: identity plus a small random displacement.
    mvs = (_identity_grid(B, h, w, jnp.float32)[None]
           + 0.05 * jax.random.normal(k3, (T, B, h, w, 2), dtype=jnp.float32))

    loss = spatio_temporal_loss2(img1, img2, mvs, factor, theta)
    loss = jax.block_until_ready(loss)
    assert loss.shape == (T - 1,)

    # Pure-JAX reference for the Pallas reduction stage (same warp preprocessing).
    d1, d0w = _warp_and_diff(img1, img2, mvs, factor)
    ref = jnp.mean(
        (jnp.abs(d1 - d0w) - jnp.abs(d1) - jnp.abs(d0w)) * theta
        + jnp.abs(d1) + jnp.abs(d0w),
        axis=(1, 2, 3, 4))
    assert jnp.allclose(loss, ref, rtol=1e-5, atol=1e-5), (loss, ref)

    print("KERNEL_OK")
</pallas_src>

<mosaic_0001>
module attributes {stable_mosaic.version = 11 : i64} {
  func.func @_st_loss_kernel(%arg0: i32, %arg1: i32, %arg2: i32, %arg3: memref<1x16x128xf32, #tpu.memory_space<vmem>>, %arg4: memref<1x16x128xf32, #tpu.memory_space<vmem>>, %arg5: memref<1x1x8x128xf32, #tpu.memory_space<vmem>>) attributes {dimension_semantics = [#tpu.dimension_semantics<parallel>, #tpu.dimension_semantics<parallel>, #tpu.dimension_semantics<arbitrary>], iteration_bounds = array<i64: 2, 1, 1>, scalar_prefetch = 0 : i64, scratch_operands = 0 : i64, tpu.core_type = #tpu.core_type<tc>, window_params = [{transform_indices = @transform_0, window_bounds = array<i64: 1, 16, 128>}, {transform_indices = @transform_1, window_bounds = array<i64: 1, 16, 128>}, {transform_indices = @transform_2, window_bounds = array<i64: 1, 1, 8, 128>}]} {
    %c0_i32 = arith.constant 0 : i32
    %0 = arith.cmpi eq, %arg2, %c0_i32 : i32
    %1 = arith.extui %0 : i1 to i32
    %c0_i32_0 = arith.constant 0 : i32
    %2 = arith.cmpi ne, %1, %c0_i32_0 : i32
    scf.if %2 {
      %cst_16 = arith.constant 0.000000e+00 : f32
      %25 = vector.broadcast %cst_16 : f32 to vector<8x128xf32>
      %c0_17 = arith.constant 0 : index
      %c0_18 = arith.constant 0 : index
      %c0_19 = arith.constant 0 : index
      %c0_20 = arith.constant 0 : index
      %26 = vector.load %arg5[%c0_17, %c0_18, %c0_19, %c0_20] : memref<1x1x8x128xf32, #tpu.memory_space<vmem>>, vector<1x1x8x128xf32>
      %27 = vector.shape_cast %26 : vector<1x1x8x128xf32> to vector<8x128xf32>
      %28 = vector.shape_cast %25 : vector<8x128xf32> to vector<1x1x8x128xf32>
      tpu.vector_store %arg5[%c0_17, %c0_18, %c0_19, %c0_20], %28 {strides = array<i32>} : memref<1x1x8x128xf32, #tpu.memory_space<vmem>>, vector<1x1x8x128xf32>,
    } else {
    }
    %c0 = arith.constant 0 : index
    %c0_1 = arith.constant 0 : index
    %c0_2 = arith.constant 0 : index
    %3 = vector.load %arg3[%c0, %c0_1, %c0_2] : memref<1x16x128xf32, #tpu.memory_space<vmem>>, vector<1x16x128xf32>
    %4 = vector.shape_cast %3 : vector<1x16x128xf32> to vector<16x128xf32>
    %c0_3 = arith.constant 0 : index
    %c0_4 = arith.constant 0 : index
    %c0_5 = arith.constant 0 : index
    %5 = vector.load %arg4[%c0_3, %c0_4, %c0_5] : memref<1x16x128xf32, #tpu.memory_space<vmem>>, vector<1x16x128xf32>
    %6 = vector.shape_cast %5 : vector<1x16x128xf32> to vector<16x128xf32>
    %7 = arith.subf %4, %6 : vector<16x128xf32>
    %8 = math.absf %7 : vector<16x128xf32>
    %cst = arith.constant 5.000000e-01 : f32
    %9 = vector.broadcast %cst : f32 to vector<16x128xf32>
    %10 = arith.mulf %9, %8 : vector<16x128xf32>
    %11 = math.absf %4 : vector<16x128xf32>
    %12 = math.absf %6 : vector<16x128xf32>
    %13 = arith.addf %11, %12 : vector<16x128xf32>
    %cst_6 = arith.constant 5.000000e-01 : f32
    %14 = vector.broadcast %cst_6 : f32 to vector<16x128xf32>
    %15 = arith.mulf %14, %13 : vector<16x128xf32>
    %16 = arith.addf %10, %15 : vector<16x128xf32>
    %17 = vector.shape_cast %16 : vector<16x128xf32> to vector<2x8x128xf32>
    %c0_7 = arith.constant 0 : index
    %c0_8 = arith.constant 0 : index
    %c0_9 = arith.constant 0 : index
    %c0_10 = arith.constant 0 : index
    %18 = vector.load %arg5[%c0_7, %c0_8, %c0_9, %c0_10] : memref<1x1x8x128xf32, #tpu.memory_space<vmem>>, vector<1x1x8x128xf32>
    %19 = vector.shape_cast %18 : vector<1x1x8x128xf32> to vector<8x128xf32>
    %cst_11 = arith.constant dense<0.000000e+00> : vector<8x128xf32>
    %20 = vector.multi_reduction <add>, %17, %cst_11 [0] : vector<2x8x128xf32> to vector<8x128xf32>
    %21 = arith.addf %19, %20 : vector<8x128xf32>
    %c0_12 = arith.constant 0 : index
    %c0_13 = arith.constant 0 : index
    %c0_14 = arith.constant 0 : index
    %c0_15 = arith.constant 0 : index
    %22 = vector.load %arg5[%c0_12, %c0_13, %c0_14, %c0_15] : memref<1x1x8x128xf32, #tpu.memory_space<vmem>>, vector<1x1x8x128xf32>
    %23 = vector.shape_cast %22 : vector<1x1x8x128xf32> to vector<8x128xf32>
    %24 = vector.shape_cast %21 : vector<8x128xf32> to vector<1x1x8x128xf32>
    tpu.vector_store %arg5[%c0_12, %c0_13, %c0_14, %c0_15], %24 {strides = array<i32>} : memref<1x1x8x128xf32, #tpu.memory_space<vmem>>, vector<1x1x8x128xf32>,
    return
  }
  func.func @transform_0(%arg0: i32, %arg1: i32, %arg2: i32) -> (i32, i32, i32) {
    %c1_i32 = arith.constant 1 : i32
    %0 = arith.muli %arg1, %c1_i32 : i32
    %1 = arith.addi %0, %arg2 : i32
    %c0_i32 = arith.constant 0 : i32
    %c0_i32_0 = arith.constant 0 : i32
    return %arg0, %1, %c0_i32 : i32, i32, i32
  }
  func.func @transform_1(%arg0: i32, %arg1: i32, %arg2: i32) -> (i32, i32, i32) {
    %c1_i32 = arith.constant 1 : i32
    %0 = arith.muli %arg1, %c1_i32 : i32
    %1 = arith.addi %0, %arg2 : i32
    %c0_i32 = arith.constant 0 : i32
    %c0_i32_0 = arith.constant 0 : i32
    return %arg0, %1, %c0_i32 : i32, i32, i32
  }
  func.func @transform_2(%arg0: i32, %arg1: i32, %arg2: i32) -> (i32, i32, i32, i32) {
    %c0_i32 = arith.constant 0 : i32
    %c0_i32_0 = arith.constant 0 : i32
    %c0_i32_1 = arith.constant 0 : i32
    return %arg0, %arg1, %c0_i32, %c0_i32_0 : i32, i32, i32, i32
  }
}

</mosaic_0001>

<llo_original>
// kernel: tpu_custom_call.1
$region0: #{tpu_custom_call.1}
  #allocation0 [shape = 'u32[]', space=smem, size = 0x4, offset = 0x4, fixed_abs, tag = 'smem constant byte address 0x4 - core index']
  #allocation1 [shape = 'u32[144,128]{1,0:T(1,128)}', space=vmem, size = 0x12000, scoped, tag = 'internal scratch']
  %s0 = inlined_call_operand.hbm [shape: f32[2,16,128], index: 0, kind: input, shape index: {}]
  %s1 = inlined_call_operand.hbm [shape: f32[2,16,128], index: 1, kind: input, shape index: {}]
  %s2 = inlined_call_operand.hbm [shape: f32[2,1,8,128], index: 2, kind: output, shape index: {}]
  %s3 = sld [smem:[#allocation0]]
  $region53: #{tpu_custom_call.1} parent=0
    _
  %s5 = ssub.s32 1, %s3
  %s6 = scalar_select 0, %s5, %s3
  $region1: #{tpu_custom_call.1} parent=0
    #allocation2 [shape = 'u8[16384]{0}', space=vmem, size = 0x4000, scoped, tag = 'input window, operand 0']
    #allocation3 [shape = 's32[2]{0}', space=sflag, size = 0x8, scoped, tag = 'scoped memory for tpu_custom_call.1']
    #allocation4 [shape = 's32[2]{0}', space=sflag, size = 0x8, scoped, tag = 'scoped memory for tpu_custom_call.1']
    #allocation5 [shape = 'u8[16384]{0}', space=vmem, size = 0x4000, scoped, tag = 'input window, operand 1']
    #allocation6 [shape = 's32[2]{0}', space=sflag, size = 0x8, scoped, tag = 'scoped memory for tpu_custom_call.1']
    #allocation7 [shape = 'u8[8192]{0}', space=vmem, size = 0x2000, scoped, tag = 'output window, operand 0']
    %7 = vsyncpa [#allocation3], 0
    %s8 = scalar_lea.sflag [#allocation3], 1
    %9 = vsyncpa %s8, 0
    %10 = vsyncpa [#allocation6], 0
    %s11 = scalar_lea.sflag [#allocation6], 1
    %12 = vsyncpa %s11, 0
    %13 = vsyncpa [#allocation4], 0
    %s14 = scalar_lea.sflag [#allocation4], 1
    %15 = vsyncpa %s14, 0
    loop: start=0, step=1, limit=4
    $region2: #{tpu_custom_call.1} parent=1 // loop_pre_header
      _
    $region3: #{tpu_custom_call.1} parent=1 // loop_header
      %s17 = sphi 0, %s21
      %p18 = scmp.ge.s32.totalorder %s17, 4
      %s24 = sphi 0, %s43
      %s25 = sphi 0, %s39
      %s26 = sphi 0, %s35
      %s27 = sphi 0, %s24
      %s28 = sphi 0, %s25
      %s29 = sphi 0, %s26
      %s30 = sphi 0, %s27
      %s31 = sphi 0, %s28
      %s32 = sphi 0, %s29
      %s50 = sphi 0, %s52
      %s53 = sphi 0, %s50
      %s54 = sphi 0, %s53
      %s70 = sphi 0, %s54
      %s80 = sphi 0, %s82
      %s83 = sphi 0, %s80
      %s84 = sphi 0, %s83
      %s100 = sphi 0, %s84
      %s108 = sphi 0, %s110
      %s111 = sphi 0, %s108
      %s112 = sphi 0, %s111
      %s128 = sphi 0, %s112
    $region4: #{tpu_custom_call.1} parent=1 // loop_header_branch
      %20 = sbr.rel (%p18) target = $region8
    $region5: #{tpu_custom_call.1} parent=1 // loop_body
      %s22 = ssub.s32 %s17, 1
      %s23 = ssub.s32 %s17, 2
      %s33 = sadd.s32 1, %s26
      %p34 = scmp.ge.s32.totalorder %s33, 1
      %s35 = scalar_select %p34, 0, %s33
      %s36 = sadd.s32 1, %s25
      %s37 = scalar_select %p34, %s36, %s25
      %p38 = scmp.ge.s32.totalorder %s37, 1
      %s39 = scalar_select %p38, 0, %s37
      %s40 = sadd.s32 1, %s24
      %s41 = scalar_select %p38, %s40, %s24
      %p42 = scmp.ge.s32.totalorder %s41, 2
      %s43 = scalar_select %p42, 0, %s41
      %s44 = sadd.s32 %s25, %s26
      %s45 = sadd.s32 %s39, %s35
      %s46 = ssub.s32 %s24, %s43
      %s47 = ssub.s32 %s44, %s45
      %s48 = sor.u32 %s46, %s47
      %p49 = scmp.eq.s32.totalorder %s48, 0
      %s51 = sadd.s32 %s50, 1
      %s52 = scalar_select %p49, %s50, %s51
      %p55 = pneg %p49
      %p56 = scmp.eq.s32.totalorder %s17, 1
      %p57 = por %p55, %p56
      %p58 = scmp.ne.s32.totalorder %s50, %s53
      %p59 = scmp.eq.s32.totalorder %s17, 0
      %p60 = por %p58, %p59
      %p61 = scmp.ne.s32.totalorder %s50, %s53
      %p62 = scmp.eq.s32.totalorder %s22, 1
      %p63 = por %p61, %p62
      %p64 = scmp.ne.s32.totalorder %s53, %s54
      %p65 = scmp.eq.s32.totalorder %s22, 0
      %p66 = por %p64, %p65
      %p67 = scmp.ne.s32.totalorder %s53, %s54
      %p68 = scmp.eq.s32.totalorder %s23, 1
      %p69 = por %p67, %p68
      %p71 = scmp.ne.s32.totalorder %s54, %s70
      %p72 = scmp.eq.s32.totalorder %s23, 0
      %p73 = por %p71, %p72
      %s74 = sadd.s32 %s25, %s26
      %s75 = sadd.s32 %s39, %s35
      %s76 = ssub.s32 %s24, %s43
      %s77 = ssub.s32 %s74, %s75
      %s78 = sor.u32 %s76, %s77
      %p79 = scmp.eq.s32.totalorder %s78, 0
      %s81 = sadd.s32 %s80, 1
      %s82 = scalar_select %p79, %s80, %s81
      %p85 = pneg %p79
      %p86 = scmp.eq.s32.totalorder %s17, 1
      %p87 = por %p85, %p86
      %p88 = scmp.ne.s32.totalorder %s80, %s83
      %p89 = scmp.eq.s32.totalorder %s17, 0
      %p90 = por %p88, %p89
      %p91 = scmp.ne.s32.totalorder %s80, %s83
      %p92 = scmp.eq.s32.totalorder %s22, 1
      %p93 = por %p91, %p92
      %p94 = scmp.ne.s32.totalorder %s83, %s84
      %p95 = scmp.eq.s32.totalorder %s22, 0
      %p96 = por %p94, %p95
      %p97 = scmp.ne.s32.totalorder %s83, %s84
      %p98 = scmp.eq.s32.totalorder %s23, 1
      %p99 = por %p97, %p98
      %p101 = scmp.ne.s32.totalorder %s84, %s100
      %p102 = scmp.eq.s32.totalorder %s23, 0
      %p103 = por %p101, %p102
      %s104 = ssub.s32 %s24, %s43
      %s105 = ssub.s32 %s25, %s39
      %s106 = sor.u32 %s104, %s105
      %p107 = scmp.eq.s32.totalorder %s106, 0
      %s109 = sadd.s32 %s108, 1
      %s110 = scalar_select %p107, %s108, %s109
      %p113 = pneg %p107
      %p114 = scmp.eq.s32.totalorder %s17, 1
      %p115 = por %p113, %p114
      %p116 = scmp.ne.s32.totalorder %s108, %s111
      %p117 = scmp.eq.s32.totalorder %s17, 0
      %p118 = por %p116, %p117
      %p119 = scmp.ne.s32.totalorder %s108, %s111
      %p120 = scmp.eq.s32.totalorder %s22, 1
      %p121 = por %p119, %p120
      %p122 = scmp.ne.s32.totalorder %s111, %s112
      %p123 = scmp.eq.s32.totalorder %s22, 0
      %p124 = por %p122, %p123
      %p125 = scmp.ne.s32.totalorder %s111, %s112
      %p126 = scmp.eq.s32.totalorder %s23, 1
      %p127 = por %p125, %p126
      %p129 = scmp.ne.s32.totalorder %s112, %s128
      %p130 = scmp.eq.s32.totalorder %s23, 0
      %p131 = por %p129, %p130
      %p132 = scmp.le.s32.totalorder 1, %s17
      %p133 = scmp.lt.s32.totalorder %s17, 3
      %p134 = pnand %p132, %p133
      %p135 = pneg %p134
      // Predicated region
      $region9: #{tpu_custom_call.1} parent=5 // pred_check
        _
      $region10: #{tpu_custom_call.1} parent=5 // pred_check_branch
        %137 = sbr.rel (%p134) target = $region12
      $region11: #{tpu_custom_call.1} parent=5 // pred_region
        %s138 = ssub.s32 %s17, 1
      $region12: #{tpu_custom_call.1} parent=5 // pred_fallthru
        _
      %p139 = scmp.lt.s32.totalorder %s17, 2
      // Predicated region
      $region13: #{tpu_custom_call.1} parent=5 // pred_check
        %p140 = pneg %p139
      $region14: #{tpu_custom_call.1} parent=5 // pred_check_branch
        %142 = sbr.rel (%p140) target = $region16
      $region15: #{tpu_custom_call.1} parent=5 // pred_region
        // Predicated region
        $region17: #{tpu_custom_call.1} parent=15 // pred_check
          %p143 = pneg %p60
        $region18: #{tpu_custom_call.1} parent=15 // pred_check_branch
          %145 = sbr.rel (%p143) target = $region20
        $region19: #{tpu_custom_call.1} parent=15 // pred_region
          %s146 = sand.u32 %s50, 1
          %s147 = scalar_lea.sflag [#allocation3], %s146
          %s148 = sand.u32 %s50, 1
          %s149 = smul.addr %s148, 16
          %s150 = scalar_lea.vmem [#allocation2], %s149
          %s151 = sadd.s32 %s25, %s26
          %s152 = smul.u32 2, %s151
          %s154 = ssub.s32 256, 256
          %155 = vsyncadd %s147, %s154
          %s156 = smul.addr %s24, 2
          %s157 = sadd.s32 %s152, %s156
          %s158 = smul.addr %s157, 128
          %s159 = scalar_lea.hbm %s0, %s158
          %s160 = sshll.u32 %s150, 4
          %s161 = int_to_ptr.vmem [resolvable:$true] %s160
          %166 = dma.hbm_to_vmem [thread:$0]  %s159, 256, %s161, %s147, 128, 128, 8
        $region20: #{tpu_custom_call.1} parent=15 // pred_fallthru
          _
        // Predicated region
        $region21: #{tpu_custom_call.1} parent=15 // pred_check
          %p167 = pneg %p90
        $region22: #{tpu_custom_call.1} parent=15 // pred_check_branch
          %169 = sbr.rel (%p167) target = $region24
        $region23: #{tpu_custom_call.1} parent=15 // pred_region
          %s170 = sand.u32 %s80, 1
          %s171 = scalar_lea.sflag [#allocation6], %s170
          %s172 = sand.u32 %s80, 1
          %s173 = smul.addr %s172, 16
          %s174 = scalar_lea.vmem [#allocation5], %s173
          %s175 = sadd.s32 %s25, %s26
          %s176 = smul.u32 2, %s175
          %s178 = ssub.s32 256, 256
          %179 = vsyncadd %s171, %s178
          %s180 = smul.addr %s24, 2
          %s181 = sadd.s32 %s176, %s180
          %s182 = smul.addr %s181, 128
          %s183 = scalar_lea.hbm %s1, %s182
          %s184 = sshll.u32 %s174, 4
          %s185 = int_to_ptr.vmem [resolvable:$true] %s184
          %190 = dma.hbm_to_vmem [thread:$0]  %s183, 256, %s185, %s171, 128, 128, 8
        $region24: #{tpu_custom_call.1} parent=15 // pred_fallthru
          _
      $region16: #{tpu_custom_call.1} parent=5 // pred_fallthru
        _
      %p191 = scmp.le.s32.totalorder 1, %s17
      %p192 = scmp.lt.s32.totalorder %s17, 3
      %p193 = pnand %p191, %p192
      %p194 = pneg %p193
      // Predicated region
      $region25: #{tpu_custom_call.1} parent=5 // pred_check
        _
      $region26: #{tpu_custom_call.1} parent=5 // pred_check_branch
        %196 = sbr.rel (%p193) target = $region28
      $region27: #{tpu_custom_call.1} parent=5 // pred_region
        %s197 = ssub.s32 %s17, 1
        %s198 = sand.u32 %s53, 1
        %s199 = scalar_lea.sflag [#allocation3], %s198
        %s200 = sand.u32 %s53, 1
        %s201 = smul.addr %s200, 16
        %s202 = scalar_lea.vmem [#allocation2], %s201
        // Predicated region
        $region29: #{tpu_custom_call.1} parent=27 // pred_check
          %p203 = pneg %p66
        $region30: #{tpu_custom_call.1} parent=27 // pred_check_branch
          %205 = sbr.rel (%p203) target = $region32
        $region31: #{tpu_custom_call.1} parent=27 // pred_region
          %206 = dma.done %s199, 256
        $region32: #{tpu_custom_call.1} parent=27 // pred_fallthru
          _
        %s207 = sand.u32 %s83, 1
        %s208 = scalar_lea.sflag [#allocation6], %s207
        %s209 = sand.u32 %s83, 1
        %s210 = smul.addr %s209, 16
        %s211 = scalar_lea.vmem [#allocation5], %s210
        // Predicated region
        $region33: #{tpu_custom_call.1} parent=27 // pred_check
          %p212 = pneg %p96
        $region34: #{tpu_custom_call.1} parent=27 // pred_check_branch
          %214 = sbr.rel (%p212) target = $region36
        $region35: #{tpu_custom_call.1} parent=27 // pred_region
          %215 = dma.done %s208, 256
        $region36: #{tpu_custom_call.1} parent=27 // pred_fallthru
          _
        %s216 = sand.u32 %s53, 1
        %s217 = scalar_lea.sflag [#allocation3], %s216
        %s218 = sand.u32 %s53, 1
        %s219 = smul.addr %s218, 16
        %s220 = scalar_lea.vmem [#allocation2], %s219
        %p221 = pneg %p66
        %p222 = pneg %p63
        %s223 = sand.u32 %s83, 1
        %s224 = scalar_lea.sflag [#allocation6], %s223
        %s225 = sand.u32 %s83, 1
        %s226 = smul.addr %s225, 16
        %s227 = scalar_lea.vmem [#allocation5], %s226
        %p228 = pneg %p96
        %p229 = pneg %p93
        %p230 = pneg %p124
        %p231 = pneg %p121
        %s232 = sand.u32 %s111, 1
        %s233 = scalar_lea.sflag [#allocation4], %s232
        %s234 = sand.u32 %s111, 1
        %s235 = smul.addr %s234, 8
        %s236 = scalar_lea.vmem [#allocation7], %s235
        %s237 = sadd.s32 %s28, %s29
        %s238 = smul.u32 2, %s237
        %s239 = sadd.s32 %s28, %s29
        %s240 = smul.u32 2, %s239
        %p241 = scmp.eq.s32.totalorder %s29, 0
        // Predicated region
        $region37: #{tpu_custom_call.1} parent=27 // pred_check
          %p242 = pneg %p241
        $region38: #{tpu_custom_call.1} parent=27 // pred_check_branch
          %244 = sbr.rel (%p242) target = $region40
        $region39: #{tpu_custom_call.1} parent=27 // pred_region
          %245 = vst [vmem:[%s236] sm:$0xff] 0.0
        $region40: #{tpu_custom_call.1} parent=27 // pred_fallthru
          _
        %v246 = vld [vmem:[%s202] sm:$0xff]
        %v247 = vld [vmem:[%s202 + $0x8] sm:$0xff]
        %v248 = vld [vmem:[%s211] sm:$0xff]
        %v249 = vld [vmem:[%s211 + $0x8] sm:$0xff]
        %v250 = vsub.f32 %v246, %v248
        %v251 = vsub.f32 %v247, %v249
        %v252 = vand.u32 2147483647, %v250
        %v253 = vand.u32 2147483647, %v251
        %v254 = vmul.f32 %v252, 0.5
        %v255 = vmul.f32 %v253, 0.5
        %v256 = vand.u32 2147483647, %v246
        %v257 = vand.u32 2147483647, %v247
        %v258 = vand.u32 2147483647, %v248
        %v259 = vand.u32 2147483647, %v249
        %v260 = vadd.f32 %v256, %v258
        %v261 = vadd.f32 %v257, %v259
        %v262 = vmul.f32 %v260, 0.5
        %v263 = vmul.f32 %v261, 0.5
        %v264 = vadd.f32 %v254, %v262
        %v265 = vadd.f32 %v255, %v263
        %v266 = vld [vmem:[%s236] sm:$0xff]
        %v267 = vadd.f32 %v264, %v265
        %v268 = vadd.f32 %v266, %v267
        %269 = vst [vmem:[%s236] sm:$0xff] %v268
        %s270 = sand.u32 %s111, 1
        %s271 = scalar_lea.sflag [#allocation4], %s270
        %s272 = sand.u32 %s111, 1
        %s273 = smul.addr %s272, 8
        %s274 = scalar_lea.vmem [#allocation7], %s273
        // Predicated region
        $region41: #{tpu_custom_call.1} parent=27 // pred_check
          %p275 = pneg %p121
        $region42: #{tpu_custom_call.1} parent=27 // pred_check_branch
          %277 = sbr.rel (%p275) target = $region44
        $region43: #{tpu_custom_call.1} parent=27 // pred_region
          %s279 = ssub.s32 128, 128
          %280 = vsyncadd %s271, %s279
          %s281 = sadd.s32 %s28, %s27
          %s282 = smul.addr %s281, 128
          %s283 = scalar_lea.hbm %s2, %s282
          %s285 = sshll.u32 %s274, 4
          %s286 = int_to_ptr.vmem [resolvable:$true] %s285
          %288 = dma.vmem_to_hbm [thread:$0]  %s286, 128, %s283, %s271
        $region44: #{tpu_custom_call.1} parent=27 // pred_fallthru
          _
      $region28: #{tpu_custom_call.1} parent=5 // pred_fallthru
        _
      %p289 = scmp.le.s32.totalorder 2, %s17
      // Predicated region
      $region45: #{tpu_custom_call.1} parent=5 // pred_check
        %p290 = pneg %p289
      $region46: #{tpu_custom_call.1} parent=5 // pred_check_branch
        %292 = sbr.rel (%p290) target = $region48
      $region47: #{tpu_custom_call.1} parent=5 // pred_region
        %s293 = ssub.s32 %s17, 2
        // Predicated region
        $region49: #{tpu_custom_call.1} parent=47 // pred_check
          %p294 = pneg %p127
        $region50: #{tpu_custom_call.1} parent=47 // pred_check_branch
          %296 = sbr.rel (%p294) target = $region52
        $region51: #{tpu_custom_call.1} parent=47 // pred_region
          %s297 = sand.u32 %s112, 1
          %s298 = scalar_lea.sflag [#allocation4], %s297
          %s299 = sand.u32 %s112, 1
          %s300 = smul.addr %s299, 8
          %s301 = scalar_lea.vmem [#allocation7], %s300
          %302 = dma.done %s298, 128
        $region52: #{tpu_custom_call.1} parent=47 // pred_fallthru
          _
      $region48: #{tpu_custom_call.1} parent=5 // pred_fallthru
        _
    $region6: #{tpu_custom_call.1} parent=1 // loop_footer
      %s21 = sadd.s32 1, %s17
    $region7: #{tpu_custom_call.1} parent=1 // loop_footer_branch
      %16 = sbr.rel target = $region3
    $region8: #{tpu_custom_call.1} parent=1 // loop_exit
      _
    %303 = vsyncpa [#allocation3], 1
    %s304 = scalar_lea.sflag [#allocation3], 1
    %305 = vsyncpa %s304, 1
    %306 = vsyncpa [#allocation6], 1
    %s307 = scalar_lea.sflag [#allocation6], 1
    %308 = vsyncpa %s307, 1
    %309 = vsyncpa [#allocation4], 1
    %s310 = scalar_lea.sflag [#allocation4], 1
    %311 = vsyncpa %s310, 1

</llo_original>
